<compile_context>
chip_gen: v5e
topology: v5e:2x2
jax: 0.10.0
libtpu: 0.0.40
codegen_flags: <defaults>
</compile_context>

<pallas_src>
import functools

import jax
import jax.numpy as jnp
from jax.experimental import pallas as pl
from jax.experimental.pallas import tpu as pltpu

_LANES = 128


def _logreg_kernel(x_ref, w_ref, b_ref, o_ref):
    # Everything resident in VMEM; matmul on MXU (f32 accumulate), bias add on
    # VPU, sigmoid's exp on EUP. Output store is lane-dense (D_out_pad % 128 == 0).
    x = x_ref[...]                                   # [B, D_in]
    w = w_ref[...]                                   # [D_in, D_out_pad]
    b = b_ref[...]                                   # [1, D_out_pad]
    z = jnp.dot(x, w, preferred_element_type=jnp.float32) + b
    o_ref[...] = jax.nn.sigmoid(z).astype(o_ref.dtype)


def prepare_params(weight, bias):
    """One-time layout prep (model-load time, NOT per-call).

    weight: [D_out, D_in] (PyTorch nn.Linear layout), bias: [D_out].
    Returns weight as [D_in, D_out_pad] and bias as [1, D_out_pad], with D_out
    zero-padded up to a multiple of 128 so the kernel output is lane-dense.
    Zero-padded columns produce sigmoid(0)=0.5 which the wrapper slices away.
    """
    d_out, d_in = weight.shape
    d_out_pad = ((d_out + _LANES - 1) // _LANES) * _LANES
    w_t = jnp.zeros((d_in, d_out_pad), weight.dtype).at[:, :d_out].set(weight.T)
    b2 = jnp.zeros((1, d_out_pad), bias.dtype).at[0, :d_out].set(bias)
    return w_t, b2, d_out


@functools.partial(jax.jit, static_argnames=("d_out",))
def logistic_regression(x, w_t, b2, d_out):
    """x: [B, D_in] f32; w_t/b2 from prepare_params(); returns [B, d_out]."""
    B, _ = x.shape
    d_out_pad = w_t.shape[1]

    out_padded = pl.pallas_call(
        _logreg_kernel,
        out_shape=jax.ShapeDtypeStruct((B, d_out_pad), jnp.float32),
        # Whole-array VMEM blocks, no grid -> no pipeline prologue/epilogue,
        # no per-operand double-buffer allocation.
        in_specs=[
            pl.BlockSpec(memory_space=pltpu.MemorySpace.VMEM),
            pl.BlockSpec(memory_space=pltpu.MemorySpace.VMEM),
            pl.BlockSpec(memory_space=pltpu.MemorySpace.VMEM),
        ],
        out_specs=pl.BlockSpec(memory_space=pltpu.MemorySpace.VMEM),
    )(x, w_t, b2)

    return out_padded[:, :d_out]


if __name__ == "__main__":
    # Small shapes consistent with the module: batch=8, input_dim=32, output_dim=16.
    B, D_in, D_out = 8, 32, 16
    key = jax.random.PRNGKey(0)
    kx, kw, kb = jax.random.split(key, 3)

    x = jax.random.normal(kx, (B, D_in), dtype=jnp.float32)
    # Parameter init mirroring nn.Linear's uniform(-1/sqrt(in), 1/sqrt(in)).
    bound = 1.0 / (D_in ** 0.5)
    weight = jax.random.uniform(kw, (D_out, D_in), minval=-bound, maxval=bound,
                                dtype=jnp.float32)
    bias = jax.random.uniform(kb, (D_out,), minval=-bound, maxval=bound,
                              dtype=jnp.float32)

    # One-time parameter layout prep (transpose + lane padding).
    w_t, b2, d_out = prepare_params(weight, bias)
    w_t, b2 = jax.block_until_ready((w_t, b2))

    out = logistic_regression(x, w_t, b2, d_out)
    out = jax.block_until_ready(out)

    # Sanity check against plain-JAX reference (pure f32 path -> tight tol).
    ref = jax.nn.sigmoid(x @ weight.T + bias)
    assert out.shape == (B, D_out)
    assert jnp.allclose(out, ref, atol=1e-5, rtol=1e-5)

    print("KERNEL_OK")
</pallas_src>

<mosaic_0001>
module attributes {stable_mosaic.version = 11 : i64} {
  func.func @_logreg_kernel(%arg0: memref<8x32xf32, #tpu.memory_space<vmem>>, %arg1: memref<32x128xf32, #tpu.memory_space<vmem>>, %arg2: memref<1x128xf32, #tpu.memory_space<vmem>>, %arg3: memref<8x128xf32, #tpu.memory_space<vmem>>) attributes {dimension_semantics = [], scalar_prefetch = 0 : i64, scratch_operands = 0 : i64, tpu.core_type = #tpu.core_type<tc>} {
    %c0 = arith.constant 0 : index
    %c0_0 = arith.constant 0 : index
    %0 = vector.load %arg0[%c0, %c0_0] : memref<8x32xf32, #tpu.memory_space<vmem>>, vector<8x32xf32>
    %c0_1 = arith.constant 0 : index
    %c0_2 = arith.constant 0 : index
    %1 = vector.load %arg1[%c0_1, %c0_2] : memref<32x128xf32, #tpu.memory_space<vmem>>, vector<32x128xf32>
    %c0_3 = arith.constant 0 : index
    %c0_4 = arith.constant 0 : index
    %2 = vector.load %arg2[%c0_3, %c0_4] : memref<1x128xf32, #tpu.memory_space<vmem>>, vector<1x128xf32>
    %cst = arith.constant dense<0.000000e+00> : vector<8x128xf32>
    %3 = tpu.matmul %0, %1, %cst {dimension_numbers = #tpu.dot_dimension_numbers<[1], [0], [0], [1], [0, 0, 1, 1], [], []>} : vector<8x32xf32>, vector<32x128xf32>, vector<8x128xf32> -> vector<8x128xf32>
    %4 = vector.broadcast %2 : vector<1x128xf32> to vector<8x128xf32>
    %5 = arith.addf %3, %4 : vector<8x128xf32>
    %6 = arith.negf %5 : vector<8x128xf32>
    %7 = math.exp %6 : vector<8x128xf32>
    %cst_5 = arith.constant 1.000000e+00 : f32
    %8 = vector.broadcast %cst_5 : f32 to vector<8x128xf32>
    %9 = arith.addf %8, %7 : vector<8x128xf32>
    %10 = arith.divf %8, %9 : vector<8x128xf32>
    %c0_6 = arith.constant 0 : index
    %c0_7 = arith.constant 0 : index
    %11 = vector.load %arg3[%c0_6, %c0_7] : memref<8x128xf32, #tpu.memory_space<vmem>>, vector<8x128xf32>
    tpu.vector_store %arg3[%c0_6, %c0_7], %10 {strides = array<i32>} : memref<8x128xf32, #tpu.memory_space<vmem>>, vector<8x128xf32>,
    return
  }
}

</mosaic_0001>

<llo_original>
// kernel: logistic_regression.1
$region0: #{logistic_regression.1}
  #allocation0 [shape = 'u32[]', space=smem, size = 0x4, offset = 0x4, fixed_abs, tag = 'smem constant byte address 0x4 - core index']
  #allocation1 [shape = 'u32[72,128]{1,0:T(1,128)}', space=vmem, size = 0x9000, scoped, tag = 'internal scratch']
  %s0 = inlined_call_operand.hbm [shape: f32[8,32], index: 0, kind: input, shape index: {}]
  %s1 = inlined_call_operand.hbm [shape: f32[32,128], index: 1, kind: input, shape index: {}]
  %s2 = inlined_call_operand.vmem [shape: f32[1,128], index: 2, kind: input, shape index: {}]
  %s3 = inlined_call_operand.hbm [shape: f32[8,128], index: 3, kind: output, shape index: {}]
  %s4 = sld [smem:[#allocation0]]
  $region30: #{logistic_regression.1} parent=0
    _
  %s6 = ssub.s32 1, %s4
  %s7 = scalar_select 0, %s6, %s4
  $region1: #{logistic_regression.1} parent=0
    #allocation2 [shape = 'u8[4096]{0}', space=vmem, size = 0x1000, scoped, tag = 'input window, operand 0, single buffered']
    #allocation3 [shape = 's32[1]{0}', space=sflag, size = 0x4, scoped, tag = 'scoped memory for logistic_regression.1']
    #allocation4 [shape = 's32[1]{0}', space=sflag, size = 0x4, scoped, tag = 'scoped memory for logistic_regression.1']
    #allocation5 [shape = 'u8[16384]{0}', space=vmem, size = 0x4000, scoped, tag = 'input window, operand 1, single buffered']
    #allocation6 [shape = 's32[1]{0}', space=sflag, size = 0x4, scoped, tag = 'scoped memory for logistic_regression.1']
    #allocation7 [shape = 'u8[4096]{0}', space=vmem, size = 0x1000, scoped, tag = 'output window, operand 0, single buffered']
    %8 = vsyncpa [#allocation3], 0
    %9 = vsyncpa [#allocation6], 0
    %10 = vsyncpa [#allocation4], 0
    // Predicated region
    $region2: #{logistic_regression.1} parent=1 // pred_check
      _
    $region3: #{logistic_regression.1} parent=1 // pred_check_branch
      %12 = sbr.rel (0) target = $region5
    $region4: #{logistic_regression.1} parent=1 // pred_region
      %14 = vsyncadd [#allocation3], 0
      %s16 = sshll.u32 %s0, 4
      %s17 = int_to_ptr.hbm [resolvable:$true] %s16
      %s18 = sshll.u32 [#allocation2], 4
      %s19 = int_to_ptr.vmem [resolvable:$true] %s18
      %21 = dma.hbm_to_vmem [thread:$0]  %s17, 128, %s19, [#allocation3]
    $region5: #{logistic_regression.1} parent=1 // pred_fallthru
      _
    // Predicated region
    $region6: #{logistic_regression.1} parent=1 // pred_check
      _
    $region7: #{logistic_regression.1} parent=1 // pred_check_branch
      %23 = sbr.rel (0) target = $region9
    $region8: #{logistic_regression.1} parent=1 // pred_region
      %25 = vsyncadd [#allocation6], 0
      %s26 = sshll.u32 %s1, 4
      %s27 = int_to_ptr.hbm [resolvable:$true] %s26
      %s28 = sshll.u32 [#allocation5], 4
      %s29 = int_to_ptr.vmem [resolvable:$true] %s28
      %34 = dma.hbm_to_vmem [thread:$0]  %s27, 512, %s29, [#allocation6], 128, 128, 8
    $region9: #{logistic_regression.1} parent=1 // pred_fallthru
      _
    // Predicated region
    $region10: #{logistic_regression.1} parent=1 // pred_check
      _
    $region11: #{logistic_regression.1} parent=1 // pred_check_branch
      %36 = sbr.rel (0) target = $region13
    $region12: #{logistic_regression.1} parent=1 // pred_region
      _
    $region13: #{logistic_regression.1} parent=1 // pred_fallthru
      _
    // Predicated region
    $region14: #{logistic_regression.1} parent=1 // pred_check
      _
    $region15: #{logistic_regression.1} parent=1 // pred_check_branch
      %38 = sbr.rel (0) target = $region17
    $region16: #{logistic_regression.1} parent=1 // pred_region
      %40 = dma.done [#allocation3], 128
    $region17: #{logistic_regression.1} parent=1 // pred_fallthru
      _
    // Predicated region
    $region18: #{logistic_regression.1} parent=1 // pred_check
      _
    $region19: #{logistic_regression.1} parent=1 // pred_check_branch
      %42 = sbr.rel (0) target = $region21
    $region20: #{logistic_regression.1} parent=1 // pred_region
      %44 = dma.done [#allocation6], 512
    $region21: #{logistic_regression.1} parent=1 // pred_fallthru
      _
    %v45 = vld [vmem:[#allocation2] sm:$0xff]
    %v46 = vld [vmem:[#allocation5] sm:$0xff]
    %v47 = vld [vmem:[#allocation5 + $0x8] sm:$0xff]
    %v48 = vld [vmem:[#allocation5 + $0x10] sm:$0xff]
    %v49 = vld [vmem:[#allocation5 + $0x18] sm:$0xff]
    %v50 = vld [vmem:[%s2] sm:$0x1]
    %v52 = vperm.slane %v50, 0
    %vm54 = vcmask 261120
    %v56 = vsel %vm54, %v45, 0
    %58 = vmatpush.msra.mxu0 0.0
    %59 = vmatpush.msra.mxu0 0.0
    %60 = vmatpush.msra.mxu0 0.0
    %61 = vmatpush.msra.mxu0 0.0
    %62 = vmatpush.msra.mxu0 0.0
    %63 = vmatpush.msra.mxu0 0.0
    %64 = vmatpush.msra.mxu0 0.0
    %65 = vmatpush.msra.mxu0 0.0
    %66 = vmatpush.msra.mxu0 0.0
    %67 = vmatpush.msra.mxu0 0.0
    %68 = vmatpush.msra.mxu0 0.0
    %69 = vmatpush.msra.mxu0 0.0
    %70 = vmatpush.msra.mxu0 %v49
    %71 = vmatpush.msra.mxu0 %v48
    %72 = vmatpush.msra.mxu0 %v47
    %73 = vmatpush.msra.mxu0 %v46
    %74 = vmatmul.f32.gmra.mxu0 %v56
    %v75 = vpop.f32.mrf.mxu0
    %v76 = vadd.f32 %v52, %v75
    %77 = vdwg.mxu0
    %v78 = vxor.u32 %v76, 2147483648
    %v79 = vmul.f32 %v78, 1.442695
    %v80 = vpow.pop %v79
    %v81 = vadd.f32 %v80, 1.0
    %v82 = vrcp.pop %v81
    %v83 = vmul.f32 %v81, %v82
    %v84 = vsub.f32 1.0, %v83
    %v85 = vmul.f32 %v82, %v84
    %v86 = vadd.f32 %v82, %v85
    %vm87 = vweird.f32 %v81
    %vm88 = vweird.f32 %v82
    %vm89 = vmor %vm87, %vm88
    %v90 = vsel %vm89, %v82, %v86
    %v91 = vand.u32 2147483647, %v81
    %vm92 = vcmp.eq.f32.partialorder %v91, 8.507059e+37
    %v93 = vand.u32 %v81, 2147483648
    %v94 = vor.u32 1.1754944e-38, %v93
    %v95 = vsel %vm92, %v94, %v90
    %v96 = vmul.f32 1.0, %v95
    %97 = vst [vmem:[#allocation7] sm:$0xff] %v96
    // Predicated region
    $region22: #{logistic_regression.1} parent=1 // pred_check
      _
    $region23: #{logistic_regression.1} parent=1 // pred_check_branch
      %99 = sbr.rel (0) target = $region25
    $region24: #{logistic_regression.1} parent=1 // pred_region
      %101 = vsyncadd [#allocation4], 0
      %s103 = sshll.u32 [#allocation7], 4
      %s104 = int_to_ptr.vmem [resolvable:$true] %s103
      %s105 = sshll.u32 %s3, 4
      %s106 = int_to_ptr.hbm [resolvable:$true] %s105
      %108 = dma.vmem_to_hbm [thread:$0]  %s104, 128, %s106, [#allocation4]
    $region25: #{logistic_regression.1} parent=1 // pred_fallthru
      _
    // Predicated region
    $region26: #{logistic_regression.1} parent=1 // pred_check
      _
    $region27: #{logistic_regression.1} parent=1 // pred_check_branch
      %110 = sbr.rel (0) target = $region29
    $region28: #{logistic_regression.1} parent=1 // pred_region
      %112 = dma.done [#allocation4], 128
    $region29: #{logistic_regression.1} parent=1 // pred_fallthru
      _
    %113 = vsyncpa [#allocation3], 1
    %114 = vsyncpa [#allocation6], 1
    %115 = vsyncpa [#allocation4], 1

</llo_original>
